<compile_context>
chip_gen: v7x
topology: tpu7x:2x2x1
jax: 0.10.0
libtpu: 0.0.40
codegen_flags: <defaults>
</compile_context>

<pallas_src>
import jax
import jax.numpy as jnp
from jax.experimental import pallas as pl
from jax.experimental.pallas import tpu as pltpu

HIDDEN = 20   # hidden width of the PyTorch module
HPAD = 24     # hidden width zero-padded to a sublane-friendly multiple of 8


def mlp_kernel(x_ref, w1_ref, b1_ref, w2_ref, b2_ref, o_ref):
    # x_ref:  (2, TB)      batch tile, features on sublanes / batch on lanes
    # w1_ref: (HPAD, 2)    fc1 weight, hidden zero-padded 20 -> HPAD (resident)
    # b1_ref: (HPAD, 1)    fc1 bias column (resident)
    # w2_ref: (HPAD, 1)    fc_out weight column (resident)
    # b2_ref: (1,)         fc_out bias, SMEM scalar
    # o_ref:  (1, 1, TB)   lane-dense output row for this batch tile

    x0 = x_ref[0:1, :]                       # (1, TB)  feature 0
    x1 = x_ref[1:2, :]                       # (1, TB)  feature 1

    # fc1 as two broadcast FMAs on the VPU (no MXU needed: batch is already on
    # the lane axis).  Result is (HPAD, TB), fully lane-dense.
    h = w1_ref[:, 0:1] * x0 + w1_ref[:, 1:2] * x1 + b1_ref[...]
    a1 = jnp.maximum(h, 0.0)                 # bias + ReLU at full lane width

    # fc_out (20 -> 1): weighted cross-sublane reduction (XLU) + bias.
    # Zero-padded hidden rows have zero weight/bias so they contribute nothing.
    y2 = jnp.sum(a1 * w2_ref[...], axis=0, keepdims=True) + b2_ref[0]   # (1, TB)

    # Unmasked, lane-dense store; sigmoid runs on the EUP.
    o_ref[0] = jax.nn.sigmoid(y2).astype(o_ref.dtype)


def mlp_forward(x, w1, b1, w2, b2, *, tb=65536):
    """x: (B, 2); w1: (20, 2); b1: (20,); w2: (1, 20); b2: (1,)  ->  (B, 1)."""
    B = x.shape[0]
    x = jnp.asarray(x, jnp.float32)

    # Zero-pad the tiny parameters' hidden dim to HPAD (multiple of 8).
    w1p = jnp.zeros((HPAD, 2), jnp.float32).at[:HIDDEN].set(
        jnp.asarray(w1, jnp.float32))
    b1p = jnp.zeros((HPAD, 1), jnp.float32).at[:HIDDEN, 0].set(
        jnp.asarray(b1, jnp.float32).reshape(HIDDEN))
    w2p = jnp.zeros((HPAD, 1), jnp.float32).at[:HIDDEN, 0].set(
        jnp.asarray(w2, jnp.float32).reshape(HIDDEN))
    b2s = jnp.asarray(b2, jnp.float32).reshape(1)

    # Batch tile: multiple of 128 (lane-dense blocks); don't over-pad small B.
    tb = max(128, (int(tb) // 128) * 128)
    b_pad128 = ((B + 127) // 128) * 128
    tb = min(tb, b_pad128)
    # Prefer >= 2 grid steps when the batch allows it, so the "parallel" batch
    # axis can shard across both TensorCores on v7x (harmless on v5e/v6e).
    if b_pad128 >= 256 and b_pad128 // tb < 2:
        tb = ((b_pad128 // 2 + 127) // 128) * 128

    num_tiles = pl.cdiv(b_pad128, tb)
    b_pad = num_tiles * tb

    # Feature-major repack: (B, 2) -> zero-padded (2, b_pad).  Each kernel block
    # is then a contiguous, full-lane-width (2, TB) slab.
    xt = jnp.pad(x, ((0, b_pad - B), (0, 0))).T   # (2, b_pad)

    out3 = pl.pallas_call(
        mlp_kernel,
        out_shape=jax.ShapeDtypeStruct((num_tiles, 1, tb), jnp.float32),
        grid=(num_tiles,),
        in_specs=[
            pl.BlockSpec((2, tb), lambda i: (0, i)),            # x: batch-tiled, lane-dense
            pl.BlockSpec((HPAD, 2), lambda i: (0, 0)),          # w1: resident
            pl.BlockSpec((HPAD, 1), lambda i: (0, 0)),          # b1: resident
            pl.BlockSpec((HPAD, 1), lambda i: (0, 0)),          # w2: resident
            pl.BlockSpec(memory_space=pltpu.MemorySpace.SMEM),  # b2: SMEM scalar
        ],
        out_specs=pl.BlockSpec((1, 1, tb), lambda i: (i, 0, 0)),
        compiler_params=pltpu.CompilerParams(
            dimension_semantics=("parallel",),
            # Above v5e's 16 MiB default scoped VMEM (needed for TB=64K
            # intermediates), below v7x's 64 MiB physical VMEM.
            vmem_limit_bytes=48 * 1024 * 1024,
        ),
    )(xt, w1p, b1p, w2p, b2s)

    # (num_tiles, 1, TB) row-major flattens exactly to batch order.
    return out3.reshape(b_pad)[:B].reshape(B, 1)


if __name__ == "__main__":
    key = jax.random.PRNGKey(0)
    k_x, k_w1, k_b1, k_w2, k_b2 = jax.random.split(key, 5)

    # Small batch, but large enough to exercise the >=2-tile path and the
    # ragged (zero-padded) last tile.
    B = 300
    lim1 = 1.0 / jnp.sqrt(2.0)
    lim2 = 1.0 / jnp.sqrt(20.0)
    # PyTorch nn.Linear default init: U(-1/sqrt(fan_in), 1/sqrt(fan_in)).
    w1 = jax.random.uniform(k_w1, (20, 2), jnp.float32, -lim1, lim1)
    b1 = jax.random.uniform(k_b1, (20,), jnp.float32, -lim1, lim1)
    w2 = jax.random.uniform(k_w2, (1, 20), jnp.float32, -lim2, lim2)
    b2 = jax.random.uniform(k_b2, (1,), jnp.float32, -lim2, lim2)
    x = jax.random.normal(k_x, (B, 2), jnp.float32)

    # Pure-JAX reference.
    ref = jax.nn.sigmoid(jnp.maximum(x @ w1.T + b1, 0.0) @ w2.T + b2)

    # Default tile (clamped to 2 tiles of 256 at this B) ...
    out = jax.block_until_ready(mlp_forward(x, w1, b1, w2, b2))
    # ... and a small forced tile that exercises a 3-step "parallel" grid and
    # the zero-padded ragged last tile.
    out_tiled = jax.block_until_ready(mlp_forward(x, w1, b1, w2, b2, tb=128))

    assert out.shape == (B, 1) and out_tiled.shape == (B, 1)
    assert jnp.allclose(out, ref, atol=1e-5, rtol=1e-5)
    assert jnp.allclose(out_tiled, ref, atol=1e-5, rtol=1e-5)

    print("KERNEL_OK")
</pallas_src>

<mosaic_0001>
module attributes {stable_mosaic.version = 11 : i64} {
  func.func @mlp_kernel(%arg0: i32, %arg1: memref<2x256xf32, #tpu.memory_space<vmem>>, %arg2: memref<24x2xf32, #tpu.memory_space<vmem>>, %arg3: memref<24x1xf32, #tpu.memory_space<vmem>>, %arg4: memref<24x1xf32, #tpu.memory_space<vmem>>, %arg5: memref<1xf32, #tpu.memory_space<smem>>, %arg6: memref<1x1x256xf32, #tpu.memory_space<vmem>>) attributes {dimension_semantics = [#tpu.dimension_semantics<parallel>], iteration_bounds = array<i64: 2>, scalar_prefetch = 0 : i64, scratch_operands = 0 : i64, tpu.core_type = #tpu.core_type<tc>, window_params = [{transform_indices = @transform_0, window_bounds = array<i64: 2, 256>}, {pipeline_mode = #tpu.pipeline_mode<synchronous>, transform_indices = @transform_1, window_bounds = array<i64: 24, 2>}, {pipeline_mode = #tpu.pipeline_mode<synchronous>, transform_indices = @transform_2, window_bounds = array<i64: 24, 1>}, {pipeline_mode = #tpu.pipeline_mode<synchronous>, transform_indices = @transform_3, window_bounds = array<i64: 24, 1>}, {transform_indices = @transform_4, window_bounds = array<i64: 1>}, {transform_indices = @transform_5, window_bounds = array<i64: 1, 1, 256>}]} {
    %c0 = arith.constant 0 : index
    %c0_0 = arith.constant 0 : index
    %0 = vector.load %arg1[%c0, %c0_0] : memref<2x256xf32, #tpu.memory_space<vmem>>, vector<1x256xf32>
    %c1 = arith.constant 1 : index
    %c0_1 = arith.constant 0 : index
    %1 = vector.load %arg1[%c1, %c0_1] : memref<2x256xf32, #tpu.memory_space<vmem>>, vector<1x256xf32>
    %c0_2 = arith.constant 0 : index
    %c0_3 = arith.constant 0 : index
    %2 = vector.load %arg2[%c0_2, %c0_3] : memref<24x2xf32, #tpu.memory_space<vmem>>, vector<24x1xf32>
    %3 = vector.broadcast %2 : vector<24x1xf32> to vector<24x256xf32>
    %4 = vector.broadcast %0 : vector<1x256xf32> to vector<24x256xf32>
    %5 = arith.mulf %3, %4 : vector<24x256xf32>
    %c0_4 = arith.constant 0 : index
    %c1_5 = arith.constant 1 : index
    %6 = vector.load %arg2[%c0_4, %c1_5] : memref<24x2xf32, #tpu.memory_space<vmem>>, vector<24x1xf32>
    %7 = vector.broadcast %6 : vector<24x1xf32> to vector<24x256xf32>
    %8 = vector.broadcast %1 : vector<1x256xf32> to vector<24x256xf32>
    %9 = arith.mulf %7, %8 : vector<24x256xf32>
    %10 = arith.addf %5, %9 : vector<24x256xf32>
    %c0_6 = arith.constant 0 : index
    %c0_7 = arith.constant 0 : index
    %11 = vector.load %arg3[%c0_6, %c0_7] : memref<24x1xf32, #tpu.memory_space<vmem>>, vector<24x1xf32>
    %12 = vector.broadcast %11 : vector<24x1xf32> to vector<24x256xf32>
    %13 = arith.addf %10, %12 : vector<24x256xf32>
    %cst = arith.constant 0.000000e+00 : f32
    %14 = vector.broadcast %cst : f32 to vector<24x256xf32>
    %15 = arith.maximumf %13, %14 : vector<24x256xf32>
    %c0_8 = arith.constant 0 : index
    %c0_9 = arith.constant 0 : index
    %16 = vector.load %arg4[%c0_8, %c0_9] : memref<24x1xf32, #tpu.memory_space<vmem>>, vector<24x1xf32>
    %17 = vector.broadcast %16 : vector<24x1xf32> to vector<24x256xf32>
    %18 = arith.mulf %15, %17 : vector<24x256xf32>
    %cst_10 = arith.constant dense<0.000000e+00> : vector<256xf32>
    %19 = vector.multi_reduction <add>, %18, %cst_10 [0] : vector<24x256xf32> to vector<256xf32>
    %20 = vector.shape_cast %19 : vector<256xf32> to vector<1x256xf32>
    %c0_11 = arith.constant 0 : index
    %21 = memref.load %arg5[%c0_11] : memref<1xf32, #tpu.memory_space<smem>>
    %22 = vector.broadcast %21 : f32 to vector<1x256xf32>
    %23 = arith.addf %20, %22 : vector<1x256xf32>
    %24 = arith.negf %23 : vector<1x256xf32>
    %25 = math.exp %24 : vector<1x256xf32>
    %cst_12 = arith.constant 1.000000e+00 : f32
    %26 = vector.broadcast %cst_12 : f32 to vector<1x256xf32>
    %27 = arith.addf %26, %25 : vector<1x256xf32>
    %28 = arith.divf %26, %27 : vector<1x256xf32>
    %c0_13 = arith.constant 0 : index
    %c0_14 = arith.constant 0 : index
    %c0_15 = arith.constant 0 : index
    %29 = vector.load %arg6[%c0_13, %c0_14, %c0_15] : memref<1x1x256xf32, #tpu.memory_space<vmem>>, vector<1x1x256xf32>
    %30 = vector.shape_cast %29 : vector<1x1x256xf32> to vector<1x256xf32>
    %31 = vector.shape_cast %28 : vector<1x256xf32> to vector<1x1x256xf32>
    tpu.vector_store %arg6[%c0_13, %c0_14, %c0_15], %31 {strides = array<i32>} : memref<1x1x256xf32, #tpu.memory_space<vmem>>, vector<1x1x256xf32>,
    return
  }
  func.func @transform_0(%arg0: i32) -> (i32, i32) {
    %c0_i32 = arith.constant 0 : i32
    %c0_i32_0 = arith.constant 0 : i32
    return %c0_i32, %arg0 : i32, i32
  }
  func.func @transform_1(%arg0: i32) -> (i32, i32) {
    %c0_i32 = arith.constant 0 : i32
    %c0_i32_0 = arith.constant 0 : i32
    %c0_i32_1 = arith.constant 0 : i32
    return %c0_i32, %c0_i32_0 : i32, i32
  }
  func.func @transform_2(%arg0: i32) -> (i32, i32) {
    %c0_i32 = arith.constant 0 : i32
    %c0_i32_0 = arith.constant 0 : i32
    %c0_i32_1 = arith.constant 0 : i32
    return %c0_i32, %c0_i32_0 : i32, i32
  }
  func.func @transform_3(%arg0: i32) -> (i32, i32) {
    %c0_i32 = arith.constant 0 : i32
    %c0_i32_0 = arith.constant 0 : i32
    %c0_i32_1 = arith.constant 0 : i32
    return %c0_i32, %c0_i32_0 : i32, i32
  }
  func.func @transform_4(%arg0: i32) -> i32 {
    %c0_i32 = arith.constant 0 : i32
    %c0_i32_0 = arith.constant 0 : i32
    return %c0_i32 : i32
  }
  func.func @transform_5(%arg0: i32) -> (i32, i32, i32) {
    %c0_i32 = arith.constant 0 : i32
    %c0_i32_0 = arith.constant 0 : i32
    %c0_i32_1 = arith.constant 0 : i32
    return %arg0, %c0_i32, %c0_i32_0 : i32, i32, i32
  }
}

</mosaic_0001>

<llo_original>
// kernel: tpu_custom_call.1
$region0: #{tpu_custom_call.1}
  #allocation0 [shape = 'u32[]', space=smem, size = 0x4, offset = 0x4, fixed_abs, tag = 'smem constant byte address 0x4 - core index']
  #allocation1 [shape = 'u32[144,128]{1,0:T(1,128)}', space=vmem, size = 0x12000, scoped, tag = 'internal scratch']
  #allocation2 [shape = 'f32[1]{0:T(128)S(6)}', space=smem, size = 0x200, scoped, tag = 'scoped memory for tpu_custom_call.1']
  %s0 = inlined_call_operand.vmem [shape: f32[2,512], index: 0, kind: input, shape index: {}]
  %s1 = inlined_call_operand.vmem [shape: f32[24,2], index: 1, kind: input, shape index: {}]
  %s2 = inlined_call_operand.vmem [shape: f32[24,1], index: 2, kind: input, shape index: {}]
  %s3 = inlined_call_operand.vmem [shape: f32[24,1], index: 3, kind: input, shape index: {}]
  %s4 = inlined_call_operand.<no memory space> [shape: f32[1], index: 4, kind: input, shape index: {}]
  %s5 = inlined_call_operand.hbm [shape: f32[2,1,256], index: 5, kind: output, shape index: {}]
  %s6 = sld [smem:[#allocation0]]
  $region53: #{tpu_custom_call.1} parent=0
    _
  %s8 = ssub.s32 1, %s6
  %s9 = scalar_select 0, %s8, %s6
  %10 = sst [smem:[#allocation2]] %s4
  $region1: #{tpu_custom_call.1} parent=0
    #allocation3 [shape = 'u8[2048]{0}', space=vmem, size = 0x800, scoped, tag = 'output window, operand 0']
    #allocation4 [shape = 's32[2]{0}', space=sflag, size = 0x8, scoped, tag = 'scoped memory for tpu_custom_call.1']
    %11 = vsyncpa [#allocation4], 0
    %s12 = scalar_lea.sflag [#allocation4], 1
    %13 = vsyncpa %s12, 0
    loop: start=0, step=1, limit=4
    $region2: #{tpu_custom_call.1} parent=1 // loop_pre_header
      _
    $region3: #{tpu_custom_call.1} parent=1 // loop_header
      %s15 = sphi 0, %s19
      %p16 = scmp.ge.s32.totalorder %s15, 4
      %s25 = sphi 0, %s27
      %s28 = sphi 0, %s25
      %s29 = sphi 0, %s28
      %s45 = sphi 0, %s29
      %s49 = sphi 0, %s49
      %s51 = sphi 0, %s49
      %s52 = sphi 0, %s51
      %s66 = sphi 0, %s52
      %s70 = sphi 0, %s70
      %s72 = sphi 0, %s70
      %s73 = sphi 0, %s72
      %s87 = sphi 0, %s73
      %s91 = sphi 0, %s91
      %s93 = sphi 0, %s91
      %s94 = sphi 0, %s93
      %s108 = sphi 0, %s94
      %s112 = sphi 0, %s112
      %s114 = sphi 0, %s112
      %s115 = sphi 0, %s114
      %s129 = sphi 0, %s115
      %s135 = sphi 0, %s137
      %s138 = sphi 0, %s135
      %s139 = sphi 0, %s138
      %s155 = sphi 0, %s139
    $region4: #{tpu_custom_call.1} parent=1 // loop_header_branch
      %18 = sbr.rel (%p16) target = $region8
    $region5: #{tpu_custom_call.1} parent=1 // loop_body
      %s20 = ssub.s32 %s15, 1
      %s21 = ssub.s32 %s15, 2
      %s22 = sadd.s32 %s15, 1
      %s23 = ssub.s32 %s15, %s22
      %p24 = scmp.eq.s32.totalorder %s23, 0
      %s26 = sadd.s32 %s25, 1
      %s27 = scalar_select %p24, %s25, %s26
      %p30 = pneg %p24
      %p31 = scmp.eq.s32.totalorder %s15, 1
      %p32 = por %p30, %p31
      %p33 = scmp.ne.s32.totalorder %s25, %s28
      %p34 = scmp.eq.s32.totalorder %s15, 0
      %p35 = por %p33, %p34
      %p36 = scmp.ne.s32.totalorder %s25, %s28
      %p37 = scmp.eq.s32.totalorder %s20, 1
      %p38 = por %p36, %p37
      %p39 = scmp.ne.s32.totalorder %s28, %s29
      %p40 = scmp.eq.s32.totalorder %s20, 0
      %p41 = por %p39, %p40
      %p42 = scmp.ne.s32.totalorder %s28, %s29
      %p43 = scmp.eq.s32.totalorder %s21, 1
      %p44 = por %p42, %p43
      %p46 = scmp.ne.s32.totalorder %s29, %s45
      %p47 = scmp.eq.s32.totalorder %s21, 0
      %p48 = por %p46, %p47
      %s50 = sadd.s32 %s49, 1
      %p53 = scmp.eq.s32.totalorder %s15, 1
      %p54 = scmp.ne.s32.totalorder %s49, %s51
      %p55 = scmp.eq.s32.totalorder %s15, 0
      %p56 = por %p54, %p55
      %p57 = scmp.ne.s32.totalorder %s49, %s51
      %p58 = scmp.eq.s32.totalorder %s20, 1
      %p59 = por %p57, %p58
      %p60 = scmp.ne.s32.totalorder %s51, %s52
      %p61 = scmp.eq.s32.totalorder %s20, 0
      %p62 = por %p60, %p61
      %p63 = scmp.ne.s32.totalorder %s51, %s52
      %p64 = scmp.eq.s32.totalorder %s21, 1
      %p65 = por %p63, %p64
      %p67 = scmp.ne.s32.totalorder %s52, %s66
      %p68 = scmp.eq.s32.totalorder %s21, 0
      %p69 = por %p67, %p68
      %s71 = sadd.s32 %s70, 1
      %p74 = scmp.eq.s32.totalorder %s15, 1
      %p75 = scmp.ne.s32.totalorder %s70, %s72
      %p76 = scmp.eq.s32.totalorder %s15, 0
      %p77 = por %p75, %p76
      %p78 = scmp.ne.s32.totalorder %s70, %s72
      %p79 = scmp.eq.s32.totalorder %s20, 1
      %p80 = por %p78, %p79
      %p81 = scmp.ne.s32.totalorder %s72, %s73
      %p82 = scmp.eq.s32.totalorder %s20, 0
      %p83 = por %p81, %p82
      %p84 = scmp.ne.s32.totalorder %s72, %s73
      %p85 = scmp.eq.s32.totalorder %s21, 1
      %p86 = por %p84, %p85
      %p88 = scmp.ne.s32.totalorder %s73, %s87
      %p89 = scmp.eq.s32.totalorder %s21, 0
      %p90 = por %p88, %p89
      %s92 = sadd.s32 %s91, 1
      %p95 = scmp.eq.s32.totalorder %s15, 1
      %p96 = scmp.ne.s32.totalorder %s91, %s93
      %p97 = scmp.eq.s32.totalorder %s15, 0
      %p98 = por %p96, %p97
      %p99 = scmp.ne.s32.totalorder %s91, %s93
      %p100 = scmp.eq.s32.totalorder %s20, 1
      %p101 = por %p99, %p100
      %p102 = scmp.ne.s32.totalorder %s93, %s94
      %p103 = scmp.eq.s32.totalorder %s20, 0
      %p104 = por %p102, %p103
      %p105 = scmp.ne.s32.totalorder %s93, %s94
      %p106 = scmp.eq.s32.totalorder %s21, 1
      %p107 = por %p105, %p106
      %p109 = scmp.ne.s32.totalorder %s94, %s108
      %p110 = scmp.eq.s32.totalorder %s21, 0
      %p111 = por %p109, %p110
      %s113 = sadd.s32 %s112, 1
      %p116 = scmp.eq.s32.totalorder %s15, 1
      %p117 = scmp.ne.s32.totalorder %s112, %s114
      %p118 = scmp.eq.s32.totalorder %s15, 0
      %p119 = por %p117, %p118
      %p120 = scmp.ne.s32.totalorder %s112, %s114
      %p121 = scmp.eq.s32.totalorder %s20, 1
      %p122 = por %p120, %p121
      %p123 = scmp.ne.s32.totalorder %s114, %s115
      %p124 = scmp.eq.s32.totalorder %s20, 0
      %p125 = por %p123, %p124
      %p126 = scmp.ne.s32.totalorder %s114, %s115
      %p127 = scmp.eq.s32.totalorder %s21, 1
      %p128 = por %p126, %p127
      %p130 = scmp.ne.s32.totalorder %s115, %s129
      %p131 = scmp.eq.s32.totalorder %s21, 0
      %p132 = por %p130, %p131
      %s133 = ssub.s32 %s15, %s22
      %p134 = scmp.eq.s32.totalorder %s133, 0
      %s136 = sadd.s32 %s135, 1
      %s137 = scalar_select %p134, %s135, %s136
      %p140 = pneg %p134
      %p141 = scmp.eq.s32.totalorder %s15, 1
      %p142 = por %p140, %p141
      %p143 = scmp.ne.s32.totalorder %s135, %s138
      %p144 = scmp.eq.s32.totalorder %s15, 0
      %p145 = por %p143, %p144
      %p146 = scmp.ne.s32.totalorder %s135, %s138
      %p147 = scmp.eq.s32.totalorder %s20, 1
      %p148 = por %p146, %p147
      %p149 = scmp.ne.s32.totalorder %s138, %s139
      %p150 = scmp.eq.s32.totalorder %s20, 0
      %p151 = por %p149, %p150
      %p152 = scmp.ne.s32.totalorder %s138, %s139
      %p153 = scmp.eq.s32.totalorder %s21, 1
      %p154 = por %p152, %p153
      %p156 = scmp.ne.s32.totalorder %s139, %s155
      %p157 = scmp.eq.s32.totalorder %s21, 0
      %p158 = por %p156, %p157
      %p159 = scmp.le.s32.totalorder 1, %s15
      %p160 = scmp.lt.s32.totalorder %s15, 3
      %p161 = pnand %p159, %p160
      %p162 = pneg %p161
      // Predicated region
      $region9: #{tpu_custom_call.1} parent=5 // pred_check
        _
      $region10: #{tpu_custom_call.1} parent=5 // pred_check_branch
        %164 = sbr.rel (%p161) target = $region12
      $region11: #{tpu_custom_call.1} parent=5 // pred_region
        %s165 = ssub.s32 %s15, 1
        // Predicated region
        $region13: #{tpu_custom_call.1} parent=11 // pred_check
          %p166 = pneg %p62
        $region14: #{tpu_custom_call.1} parent=11 // pred_check_branch
          %168 = sbr.rel (%p166) target = $region16
        $region15: #{tpu_custom_call.1} parent=11 // pred_region
          _
        $region16: #{tpu_custom_call.1} parent=11 // pred_fallthru
          _
        // Predicated region
        $region17: #{tpu_custom_call.1} parent=11 // pred_check
          %p169 = pneg %p83
        $region18: #{tpu_custom_call.1} parent=11 // pred_check_branch
          %171 = sbr.rel (%p169) target = $region20
        $region19: #{tpu_custom_call.1} parent=11 // pred_region
          _
        $region20: #{tpu_custom_call.1} parent=11 // pred_fallthru
          _
        // Predicated region
        $region21: #{tpu_custom_call.1} parent=11 // pred_check
          %p172 = pneg %p104
        $region22: #{tpu_custom_call.1} parent=11 // pred_check_branch
          %174 = sbr.rel (%p172) target = $region24
        $region23: #{tpu_custom_call.1} parent=11 // pred_region
          _
        $region24: #{tpu_custom_call.1} parent=11 // pred_fallthru
          _
        // Predicated region
        $region25: #{tpu_custom_call.1} parent=11 // pred_check
          %p175 = pneg %p125
        $region26: #{tpu_custom_call.1} parent=11 // pred_check_branch
          %177 = sbr.rel (%p175) target = $region28
        $region27: #{tpu_custom_call.1} parent=11 // pred_region
          _
        $region28: #{tpu_custom_call.1} parent=11 // pred_fallthru
          _
      $region12: #{tpu_custom_call.1} parent=5 // pred_fallthru
        _
      %p178 = scmp.lt.s32.totalorder %s15, 2
      // Predicated region
      $region29: #{tpu_custom_call.1} parent=5 // pred_check
        %p179 = pneg %p178
      $region30: #{tpu_custom_call.1} parent=5 // pred_check_branch
        %181 = sbr.rel (%p179) target = $region32
      $region31: #{tpu_custom_call.1} parent=5 // pred_region
        // Predicated region
        $region33: #{tpu_custom_call.1} parent=31 // pred_check
          %p182 = pneg %p35
        $region34: #{tpu_custom_call.1} parent=31 // pred_check_branch
          %184 = sbr.rel (%p182) target = $region36
        $region35: #{tpu_custom_call.1} parent=31 // pred_region
          %s185 = smul.u32 2, %s15
          %p186 = scmp.lt.s32.totalorder %s185, 3
          %s187 = scalar_select %p186, %s185, 3
          %s188 = smul.addr %s187, 2
          %s189 = scalar_lea.vmem %s0, %s188
          %s190 = smul.u32 2, %s15
        $region36: #{tpu_custom_call.1} parent=31 // pred_fallthru
          _
      $region32: #{tpu_custom_call.1} parent=5 // pred_fallthru
        _
      %p191 = scmp.le.s32.totalorder 1, %s15
      %p192 = scmp.lt.s32.totalorder %s15, 3
      %p193 = pnand %p191, %p192
      %p194 = pneg %p193
      // Predicated region
      $region37: #{tpu_custom_call.1} parent=5 // pred_check
        _
      $region38: #{tpu_custom_call.1} parent=5 // pred_check_branch
        %196 = sbr.rel (%p193) target = $region40
      $region39: #{tpu_custom_call.1} parent=5 // pred_region
        %s197 = ssub.s32 %s15, 1
        %s198 = smul.u32 2, %s20
        %p199 = scmp.lt.s32.totalorder %s198, 3
        %s200 = scalar_select %p199, %s198, 3
        %s201 = smul.addr %s200, 2
        %s202 = scalar_lea.vmem %s0, %s201
        %p203 = pneg %p41
        %p204 = pneg %p38
        %p205 = pneg %p62
        %p206 = pneg %p59
        %p207 = pneg %p83
        %p208 = pneg %p80
        %p209 = pneg %p104
        %p210 = pneg %p101
        %p211 = pneg %p125
        %p212 = pneg %p122
        %p213 = pneg %p151
        %p214 = pneg %p148
        %s215 = sand.u32 %s138, 1
        %s216 = scalar_lea.sflag [#allocation4], %s215
        %s217 = sand.u32 %s138, 1
        %s218 = smul.addr %s217, 2
        %s219 = scalar_lea.vmem [#allocation3], %s218
        %s220 = smul.u32 2, %s20
        %p221 = scmp.lt.s32.totalorder %s220, 3
        %s222 = scalar_select %p221, %s220, 3
        %s223 = smul.addr %s222, 2
        %s224 = scalar_lea.vmem %s0, %s223
        %s225 = smul.u32 2, %s20
        %v226 = vld [vmem:[%s224] ss:$2 sm:$0x3]
        %s227 = scalar_lea.vmem %s224, 1
        %v228 = vld [vmem:[%s227] ss:$2 sm:$0x3]
        %v229 = vld [vmem:[%s1] sm:$0xff]
        %v230 = vld [vmem:[%s1 + $0x8] sm:$0xff]
        %v231 = vld [vmem:[%s1 + $0x10] sm:$0xff]
        %233 = vset.pattern.permute.xlu0 0
        %234 = vperm.xlu0 %233, %v229
        %v235 = vpop.permute.xlu0 %234
        %238 = vset.pattern.permute.xlu0 0
        %239 = vperm.xlu0 %238, %v230
        %v240 = vpop.permute.xlu0 %239
        %243 = vset.pattern.permute.xlu0 0
        %244 = vperm.xlu0 %243, %v231
        %v245 = vpop.permute.xlu0 %244
        %v248 = vlaneseq
        %v249 = vshrl.u32 %v248, 7
        %v250 = vsub.s32 0, %v249
        %v251 = vrot.slane %v226, %v250
        %v252 = vlaneseq
        %v253 = vshrl.u32 %v252, 7
        %v254 = vsub.s32 1, %v253
        %v255 = vrot.slane %v226, %v254
        %v258 = vmul.f32 %v235, %v251
        %v259 = vmul.f32 %v235, %v255
        %v260 = vmul.f32 %v240, %v251
        %v261 = vmul.f32 %v240, %v255
        %v262 = vmul.f32 %v245, %v251
        %v263 = vmul.f32 %v245, %v255
        %264 = vset.pattern.permute.xlu0 1
        %265 = vperm.xlu0 %264, %v229
        %v266 = vpop.permute.xlu0 %265
        %268 = vset.pattern.permute.xlu0 1
        %269 = vperm.xlu0 %268, %v230
        %v270 = vpop.permute.xlu0 %269
        %272 = vset.pattern.permute.xlu0 1
        %273 = vperm.xlu0 %272, %v231
        %v274 = vpop.permute.xlu0 %273
        %v277 = vlaneseq
        %v278 = vshrl.u32 %v277, 7
        %v279 = vsub.s32 0, %v278
        %v280 = vrot.slane %v228, %v279
        %v281 = vlaneseq
        %v282 = vshrl.u32 %v281, 7
        %v283 = vsub.s32 1, %v282
        %v284 = vrot.slane %v228, %v283
        %v287 = vmul.f32 %v266, %v280
        %v288 = vmul.f32 %v266, %v284
        %v289 = vmul.f32 %v270, %v280
        %v290 = vmul.f32 %v270, %v284
        %v291 = vmul.f32 %v274, %v280
        %v292 = vmul.f32 %v274, %v284
        %v293 = vadd.f32 %v258, %v287
        %v294 = vadd.f32 %v259, %v288
        %v295 = vadd.f32 %v260, %v289
        %v296 = vadd.f32 %v261, %v290
        %v297 = vadd.f32 %v262, %v291
        %v298 = vadd.f32 %v263, %v292
        %v299 = vld [vmem:[%s2] sm:$0xff]
        %v300 = vld [vmem:[%s2 + $0x8] sm:$0xff]
        %v301 = vld [vmem:[%s2 + $0x10] sm:$0xff]
        %303 = vset.pattern.permute.xlu0 0
        %304 = vperm.xlu0 %303, %v299
        %v305 = vpop.permute.xlu0 %304
        %308 = vset.pattern.permute.xlu0 0
        %309 = vperm.xlu0 %308, %v300
        %v310 = vpop.permute.xlu0 %309
        %313 = vset.pattern.permute.xlu0 0
        %314 = vperm.xlu0 %313, %v301
        %v315 = vpop.permute.xlu0 %314
        %v317 = vadd.f32 %v293, %v305
        %v318 = vadd.f32 %v294, %v305
        %v319 = vadd.f32 %v295, %v310
        %v320 = vadd.f32 %v296, %v310
        %v321 = vadd.f32 %v297, %v315
        %v322 = vadd.f32 %v298, %v315
        %v323 = vmax.f32 %v317, 0.0
        %v324 = vmax.f32 %v318, 0.0
        %v325 = vmax.f32 %v319, 0.0
        %v326 = vmax.f32 %v320, 0.0
        %v327 = vmax.f32 %v321, 0.0
        %v328 = vmax.f32 %v322, 0.0
        %v329 = vld [vmem:[%s3] sm:$0xff]
        %v330 = vld [vmem:[%s3 + $0x8] sm:$0xff]
        %v331 = vld [vmem:[%s3 + $0x10] sm:$0xff]
        %333 = vset.pattern.permute.xlu0 0
        %334 = vperm.xlu0 %333, %v329
        %v335 = vpop.permute.xlu0 %334
        %338 = vset.pattern.permute.xlu0 0
        %339 = vperm.xlu0 %338, %v330
        %v340 = vpop.permute.xlu0 %339
        %343 = vset.pattern.permute.xlu0 0
        %344 = vperm.xlu0 %343, %v331
        %v345 = vpop.permute.xlu0 %344
        %v347 = vmul.f32 %v323, %v335
        %v348 = vmul.f32 %v324, %v335
        %v349 = vmul.f32 %v325, %v340
        %v350 = vmul.f32 %v326, %v340
        %v351 = vmul.f32 %v327, %v345
        %v352 = vmul.f32 %v328, %v345
        %v353 = vadd.f32 %v347, %v349
        %v354 = vadd.f32 %v353, %v351
        %v355 = vrot.slane %v354, 4
        %v356 = vadd.f32 %v354, %v355
        %v357 = vrot.slane %v356, 2
        %v358 = vadd.f32 %v356, %v357
        %v359 = vrot.slane %v358, 1
        %v360 = vadd.f32 %v358, %v359
        %v361 = vadd.f32 %v348, %v350
        %v362 = vadd.f32 %v361, %v352
        %v363 = vrot.slane %v362, 4
        %v364 = vadd.f32 %v362, %v363
        %v365 = vrot.slane %v364, 2
        %v366 = vadd.f32 %v364, %v365
        %v367 = vrot.slane %v366, 1
        %v368 = vadd.f32 %v366, %v367
        %s369 = sld [smem:[#allocation2]]
        %v370 = vstv %s369
        %v371 = vadd.f32 %v360, %v370
        %v372 = vadd.f32 %v368, %v370
        %v373 = vxor.u32 %v371, 2147483648
        %v374 = vxor.u32 %v372, 2147483648
        %v375 = vmul.f32 %v373, 1.442695
        %v376 = vpow.pop %v375
        %v377 = vmul.f32 %v374, 1.442695
        %v378 = vpow.pop %v377
        %v379 = vadd.f32 %v376, 1.0
        %v380 = vadd.f32 %v378, 1.0
        %v381 = vrcp.pop %v379
        %v382 = vmul.f32 1.0, %v381
        %v383 = vrcp.pop %v380
        %v384 = vmul.f32 1.0, %v383
        %v387 = vcombine.low %v382, %v384
        %v389 = vunpack.c.l.s4 1966171168
        %v390 = vunpack.c.0.s8 %v389
        %v391 = vlaneseq
        %v392 = vshrl.u32 %v391, 7
        %v393 = vsub.s32 %v390, %v392
        %v394 = vrot.slane %v387, %v393
        %v396 = vunpack.c.l.s4 1966171168
        %v397 = vunpack.c.0.s8 %v396
        %v398 = vlaneseq
        %v399 = vshrl.u32 %v398, 7
        %v400 = vsub.s32 %v397, %v399
        %v401 = vrot.slane %v394, %v400
        %v403 = vlaneseq
        %vm404 = vcmp.ge.s32.totalorder %v403, 0
        %vm405 = vcmp.lt.s32.totalorder %v403, 256
        %vm406 = vmand %vm404, %vm405
        %407 = vst.msk [vmem:[%s219] sm:$0x3] %vm406, %v401
        %s408 = sand.u32 %s138, 1
        %s409 = scalar_lea.sflag [#allocation4], %s408
        %s410 = sand.u32 %s138, 1
        %s411 = smul.addr %s410, 2
        %s412 = scalar_lea.vmem [#allocation3], %s411
        // Predicated region
        $region41: #{tpu_custom_call.1} parent=39 // pred_check
          %p413 = pneg %p148
        $region42: #{tpu_custom_call.1} parent=39 // pred_check_branch
          %415 = sbr.rel (%p413) target = $region44
        $region43: #{tpu_custom_call.1} parent=39 // pred_region
          %s417 = ssub.s32 32, 32
          %418 = vsyncadd %s409, %s417
          %s419 = smul.addr %s20, 2
          %s420 = smul.addr %s419, 16
          %s421 = scalar_lea.hbm %s5, %s420
          %s423 = sshll.u32 %s412, 4
          %s424 = int_to_ptr.vmem [resolvable:$true] %s423
          %426 = dma.vmem_to_hbm [thread:$0]  %s424, 32, %s421, %s409
        $region44: #{tpu_custom_call.1} parent=39 // pred_fallthru
          _
      $region40: #{tpu_custom_call.1} parent=5 // pred_fallthru
        _
      %p427 = scmp.le.s32.totalorder 2, %s15
      // Predicated region
      $region45: #{tpu_custom_call.1} parent=5 // pred_check
        %p428 = pneg %p427
      $region46: #{tpu_custom_call.1} parent=5 // pred_check_branch
        %430 = sbr.rel (%p428) target = $region48
      $region47: #{tpu_custom_call.1} parent=5 // pred_region
        %s431 = ssub.s32 %s15, 2
        // Predicated region
        $region49: #{tpu_custom_call.1} parent=47 // pred_check
          %p432 = pneg %p154
        $region50: #{tpu_custom_call.1} parent=47 // pred_check_branch
          %434 = sbr.rel (%p432) target = $region52
        $region51: #{tpu_custom_call.1} parent=47 // pred_region
          %s435 = sand.u32 %s139, 1
          %s436 = scalar_lea.sflag [#allocation4], %s435
          %s437 = sand.u32 %s139, 1
          %s438 = smul.addr %s437, 2
          %s439 = scalar_lea.vmem [#allocation3], %s438
          %440 = dma.done %s436, 32
        $region52: #{tpu_custom_call.1} parent=47 // pred_fallthru
          _
      $region48: #{tpu_custom_call.1} parent=5 // pred_fallthru
        _
    $region6: #{tpu_custom_call.1} parent=1 // loop_footer
      %s19 = sadd.s32 1, %s15
    $region7: #{tpu_custom_call.1} parent=1 // loop_footer_branch
      %14 = sbr.rel target = $region3
    $region8: #{tpu_custom_call.1} parent=1 // loop_exit
      _
    %441 = vsyncpa [#allocation4], 1
    %s442 = scalar_lea.sflag [#allocation4], 1
    %443 = vsyncpa %s442, 1

</llo_original>
